<compile_context>
chip_gen: v7x
topology: tpu7x:2x2x1
jax: 0.10.0
libtpu: 0.0.40
codegen_flags: <defaults>
</compile_context>

<pallas_src>
import jax
import jax.numpy as jnp
from jax.experimental import pallas as pl
from jax.experimental.pallas import tpu as pltpu


def dueling_q_kernel(state_ref, w12_ref, b12_ref, wbd_ref, bbd_ref,
                     wo_a_ref, wo_v_ref, bo_ref, out_ref):
    x = state_ref[...]                                   # (TILE_B, S) f32
    bf16 = jnp.bfloat16

    # Stage 1: fused fc1 | fc2  -> (TILE_B, 2*fc1), ReLU in f32.
    h = jnp.dot(x.astype(bf16), w12_ref[...],
                preferred_element_type=jnp.float32) + b12_ref[...]
    h = jnp.maximum(h, 0.0)

    # Stage 2: block-diag [wa 0; 0 wv] -> (TILE_B, A+1), ReLU in f32.
    pre = jnp.dot(h.astype(bf16), wbd_ref[...],
                  preferred_element_type=jnp.float32) + bbd_ref[...]
    pre = jnp.maximum(pre, 0.0)

    A = wo_a_ref.shape[1]
    adv = pre[:, :A]                                     # (TILE_B, A)
    val = pre[:, A:A + 1]                                # (TILE_B, 1)

    # out_layer on the implicit concat [adv, val]:
    #   cat([adv, val]) @ Wo == adv @ Wo[:A, :] + val * Wo[A:, :]   (exact)
    out = (jnp.dot(adv.astype(bf16), wo_a_ref[...],
                   preferred_element_type=jnp.float32)
           + val * wo_v_ref[...]                         # VPU broadcast-mul
           + bo_ref[...])
    out_ref[...] = out.astype(out_ref.dtype)


def dueling_q_forward(state, kparams, *, tile_b=4096):
    """state: (B, state_size) float32. Returns (B, action_size) float32."""
    w12, b12, wbd, bbd, wo_a, wo_v, bo = kparams
    B, S = state.shape
    A = bo.shape[1]
    fc1x2 = w12.shape[1]

    # Choose batch tile; when the grid has >1 step the tile's sublane dim must
    # be a multiple of 8, and B is padded up to a multiple of the tile.
    tile = int(min(tile_b, B))
    if B > tile:
        tile = max(8, (tile // 8) * 8)
        Bp = ((B + tile - 1) // tile) * tile
    else:
        Bp = B
    x = state if Bp == B else jnp.pad(state, ((0, Bp - B), (0, 0)))

    # Advisory cost hint for the XLA scheduler around the custom call.
    flops = 2 * Bp * (S * fc1x2 + fc1x2 * (A + 1) + A * A) + 4 * Bp * A
    bytes_accessed = (Bp * (S + A) * 4
                      + (w12.size + wbd.size + wo_a.size) * 2
                      + (b12.size + bbd.size + wo_v.size + bo.size) * 4)
    cost = pl.CostEstimate(flops=flops, transcendentals=0,
                           bytes_accessed=bytes_accessed)

    const = lambda i: (0, 0)   # weights/biases: resident across all batch tiles
    out = pl.pallas_call(
        dueling_q_kernel,
        out_shape=jax.ShapeDtypeStruct((Bp, A), jnp.float32),
        grid=(Bp // tile,),
        in_specs=[
            pl.BlockSpec((tile, S), lambda i: (i, 0)),   # state: tiled over batch
            pl.BlockSpec(w12.shape, const),
            pl.BlockSpec(b12.shape, const),
            pl.BlockSpec(wbd.shape, const),
            pl.BlockSpec(bbd.shape, const),
            pl.BlockSpec(wo_a.shape, const),
            pl.BlockSpec(wo_v.shape, const),
            pl.BlockSpec(bo.shape, const),
        ],
        out_specs=pl.BlockSpec((tile, A), lambda i: (i, 0)),
        compiler_params=pltpu.CompilerParams(
            dimension_semantics=("parallel",)),
        cost_estimate=cost,
    )(x, w12, b12, wbd, bbd, wo_a, wo_v, bo)
    return out[:B] if Bp != B else out


def init_params(key, state_size, action_size, fc1_units=64):
    """Per-layer params mimicking nn.Linear init: U(-1/sqrt(fan_in), 1/sqrt(fan_in)).

    Weights are stored transposed relative to PyTorch ((in, out) instead of
    (out, in)); biases as (1, out) rows.
    """
    def linear(k, fan_in, fan_out):
        kw, kb = jax.random.split(k)
        bound = 1.0 / jnp.sqrt(float(fan_in))
        w = jax.random.uniform(kw, (fan_in, fan_out), jnp.float32, -bound, bound)
        b = jax.random.uniform(kb, (1, fan_out), jnp.float32, -bound, bound)
        return w, b

    k1, k2, k3, k4, k5 = jax.random.split(key, 5)
    w1, b1 = linear(k1, state_size, fc1_units)            # fc1
    w2, b2 = linear(k2, state_size, fc1_units)            # fc2
    wa, ba = linear(k3, fc1_units, action_size)           # action_advantages
    wv, bv = linear(k4, fc1_units, 1)                     # state_value
    wo, bo = linear(k5, action_size + 1, action_size)     # out_layer
    return (w1, b1, w2, b2, wa, ba, wv, bv, wo, bo)


def prepare_kernel_params(raw_params, action_size):
    """Fuse and cast the per-layer params into the kernel's operand layout."""
    (w1, b1, w2, b2, wa, ba, wv, bv, wo, bo) = raw_params
    fc1 = w1.shape[1]
    A = action_size
    bf16 = jnp.bfloat16

    w12 = jnp.concatenate([w1, w2], axis=1).astype(bf16)           # (S, 2*fc1)
    b12 = jnp.concatenate([b1, b2], axis=1)                        # (1, 2*fc1) f32

    wbd = jnp.zeros((2 * fc1, A + 1), jnp.float32)
    wbd = wbd.at[:fc1, :A].set(wa).at[fc1:, A:].set(wv)            # block-diag
    wbd = wbd.astype(bf16)                                         # (2*fc1, A+1)
    bbd = jnp.concatenate([ba, bv], axis=1)                        # (1, A+1) f32

    wo_a = wo[:A, :].astype(bf16)                                  # (A, A)  MXU
    wo_v = wo[A:, :].astype(jnp.float32)                           # (1, A)  VPU
    return (w12, b12, wbd, bbd, wo_a, wo_v, bo)


def reference_forward(state, raw_params):
    """Pure-JAX reference with the PyTorch layer structure (same bf16 casts)."""
    (w1, b1, w2, b2, wa, ba, wv, bv, wo, bo) = raw_params
    A = wa.shape[1]
    bf16 = jnp.bfloat16
    xb = state.astype(bf16)
    x1 = jax.nn.relu(jnp.dot(xb, w1.astype(bf16),
                             preferred_element_type=jnp.float32) + b1)
    x2 = jax.nn.relu(jnp.dot(xb, w2.astype(bf16),
                             preferred_element_type=jnp.float32) + b2)
    x1 = jax.nn.relu(jnp.dot(x1.astype(bf16), wa.astype(bf16),
                             preferred_element_type=jnp.float32) + ba)
    x2 = jax.nn.relu(jnp.dot(x2.astype(bf16), wv.astype(bf16),
                             preferred_element_type=jnp.float32) + bv)
    return (jnp.dot(x1.astype(bf16), wo[:A, :].astype(bf16),
                    preferred_element_type=jnp.float32)
            + x2 * wo[A:, :].astype(jnp.float32)
            + bo)


if __name__ == "__main__":
    B, STATE_SIZE, ACTION_SIZE, FC1 = 2, 8, 4, 64

    key = jax.random.PRNGKey(0)
    k_params, k_state, k_state2 = jax.random.split(key, 3)
    raw = init_params(k_params, STATE_SIZE, ACTION_SIZE, FC1)
    kparams = prepare_kernel_params(raw, ACTION_SIZE)

    # Small single-tile case (B=2).
    state = jax.random.normal(k_state, (B, STATE_SIZE), jnp.float32)
    out = jax.block_until_ready(dueling_q_forward(state, kparams))
    ref = reference_forward(state, raw)
    assert out.shape == (B, ACTION_SIZE)
    assert jnp.allclose(out, ref, atol=1e-3, rtol=1e-3)

    # Exercise the batch grid + padding path (B=20, tile=8 -> 3 grid steps).
    state2 = jax.random.normal(k_state2, (20, STATE_SIZE), jnp.float32)
    out2 = jax.block_until_ready(dueling_q_forward(state2, kparams, tile_b=8))
    ref2 = reference_forward(state2, raw)
    assert out2.shape == (20, ACTION_SIZE)
    assert jnp.allclose(out2, ref2, atol=1e-3, rtol=1e-3)

    print("KERNEL_OK")
</pallas_src>

<mosaic_0001>
module attributes {stable_mosaic.version = 11 : i64} {
  func.func @dueling_q_kernel(%arg0: i32, %arg1: memref<2x8xf32, #tpu.memory_space<vmem>>, %arg2: memref<8x128xbf16, #tpu.memory_space<vmem>>, %arg3: memref<1x128xf32, #tpu.memory_space<vmem>>, %arg4: memref<128x5xbf16, #tpu.memory_space<vmem>>, %arg5: memref<1x5xf32, #tpu.memory_space<vmem>>, %arg6: memref<4x4xbf16, #tpu.memory_space<vmem>>, %arg7: memref<1x4xf32, #tpu.memory_space<vmem>>, %arg8: memref<1x4xf32, #tpu.memory_space<vmem>>, %arg9: memref<2x4xf32, #tpu.memory_space<vmem>>) attributes {dimension_semantics = [#tpu.dimension_semantics<parallel>], iteration_bounds = array<i64: 1>, scalar_prefetch = 0 : i64, scratch_operands = 0 : i64, tpu.core_type = #tpu.core_type<tc>, window_params = [{transform_indices = @transform_0, window_bounds = array<i64: 2, 8>}, {pipeline_mode = #tpu.pipeline_mode<synchronous>, transform_indices = @transform_1, window_bounds = array<i64: 8, 128>}, {pipeline_mode = #tpu.pipeline_mode<synchronous>, transform_indices = @transform_2, window_bounds = array<i64: 1, 128>}, {pipeline_mode = #tpu.pipeline_mode<synchronous>, transform_indices = @transform_3, window_bounds = array<i64: 128, 5>}, {pipeline_mode = #tpu.pipeline_mode<synchronous>, transform_indices = @transform_4, window_bounds = array<i64: 1, 5>}, {pipeline_mode = #tpu.pipeline_mode<synchronous>, transform_indices = @transform_5, window_bounds = array<i64: 4, 4>}, {pipeline_mode = #tpu.pipeline_mode<synchronous>, transform_indices = @transform_6, window_bounds = array<i64: 1, 4>}, {pipeline_mode = #tpu.pipeline_mode<synchronous>, transform_indices = @transform_7, window_bounds = array<i64: 1, 4>}, {transform_indices = @transform_8, window_bounds = array<i64: 2, 4>}]} {
    %c0 = arith.constant 0 : index
    %c0_0 = arith.constant 0 : index
    %0 = vector.load %arg1[%c0, %c0_0] : memref<2x8xf32, #tpu.memory_space<vmem>>, vector<2x8xf32>
    %1 = arith.truncf %0 : vector<2x8xf32> to vector<2x8xbf16>
    %c0_1 = arith.constant 0 : index
    %c0_2 = arith.constant 0 : index
    %2 = vector.load %arg2[%c0_1, %c0_2] : memref<8x128xbf16, #tpu.memory_space<vmem>>, vector<8x128xbf16>
    %cst = arith.constant dense<0.000000e+00> : vector<2x128xf32>
    %3 = tpu.matmul %1, %2, %cst {dimension_numbers = #tpu.dot_dimension_numbers<[1], [0], [0], [1], [0, 0, 1, 1], [], []>} : vector<2x8xbf16>, vector<8x128xbf16>, vector<2x128xf32> -> vector<2x128xf32>
    %c0_3 = arith.constant 0 : index
    %c0_4 = arith.constant 0 : index
    %4 = vector.load %arg3[%c0_3, %c0_4] : memref<1x128xf32, #tpu.memory_space<vmem>>, vector<1x128xf32>
    %5 = vector.broadcast %4 : vector<1x128xf32> to vector<2x128xf32>
    %6 = arith.addf %3, %5 : vector<2x128xf32>
    %cst_5 = arith.constant 0.000000e+00 : f32
    %7 = vector.broadcast %cst_5 : f32 to vector<2x128xf32>
    %8 = arith.maximumf %6, %7 : vector<2x128xf32>
    %9 = arith.truncf %8 : vector<2x128xf32> to vector<2x128xbf16>
    %c0_6 = arith.constant 0 : index
    %c0_7 = arith.constant 0 : index
    %10 = vector.load %arg4[%c0_6, %c0_7] : memref<128x5xbf16, #tpu.memory_space<vmem>>, vector<128x5xbf16>
    %cst_8 = arith.constant dense<0.000000e+00> : vector<2x5xf32>
    %11 = tpu.matmul %9, %10, %cst_8 {dimension_numbers = #tpu.dot_dimension_numbers<[1], [0], [0], [1], [0, 0, 1, 1], [], []>} : vector<2x128xbf16>, vector<128x5xbf16>, vector<2x5xf32> -> vector<2x5xf32>
    %c0_9 = arith.constant 0 : index
    %c0_10 = arith.constant 0 : index
    %12 = vector.load %arg5[%c0_9, %c0_10] : memref<1x5xf32, #tpu.memory_space<vmem>>, vector<1x5xf32>
    %13 = vector.broadcast %12 : vector<1x5xf32> to vector<2x5xf32>
    %14 = arith.addf %11, %13 : vector<2x5xf32>
    %cst_11 = arith.constant 0.000000e+00 : f32
    %15 = vector.broadcast %cst_11 : f32 to vector<2x5xf32>
    %16 = arith.maximumf %14, %15 : vector<2x5xf32>
    %17 = vector.extract_strided_slice %16 {offsets = [0, 0], sizes = [2, 4], strides = [1, 1]} : vector<2x5xf32> to vector<2x4xf32>
    %18 = vector.extract_strided_slice %16 {offsets = [0, 4], sizes = [2, 1], strides = [1, 1]} : vector<2x5xf32> to vector<2x1xf32>
    %19 = arith.truncf %17 : vector<2x4xf32> to vector<2x4xbf16>
    %c0_12 = arith.constant 0 : index
    %c0_13 = arith.constant 0 : index
    %20 = vector.load %arg6[%c0_12, %c0_13] : memref<4x4xbf16, #tpu.memory_space<vmem>>, vector<4x4xbf16>
    %cst_14 = arith.constant dense<0.000000e+00> : vector<2x4xf32>
    %21 = tpu.matmul %19, %20, %cst_14 {dimension_numbers = #tpu.dot_dimension_numbers<[1], [0], [0], [1], [0, 0, 1, 1], [], []>} : vector<2x4xbf16>, vector<4x4xbf16>, vector<2x4xf32> -> vector<2x4xf32>
    %c0_15 = arith.constant 0 : index
    %c0_16 = arith.constant 0 : index
    %22 = vector.load %arg7[%c0_15, %c0_16] : memref<1x4xf32, #tpu.memory_space<vmem>>, vector<1x4xf32>
    %23 = vector.broadcast %18 : vector<2x1xf32> to vector<2x4xf32>
    %24 = vector.broadcast %22 : vector<1x4xf32> to vector<2x4xf32>
    %25 = arith.mulf %23, %24 : vector<2x4xf32>
    %26 = arith.addf %21, %25 : vector<2x4xf32>
    %c0_17 = arith.constant 0 : index
    %c0_18 = arith.constant 0 : index
    %27 = vector.load %arg8[%c0_17, %c0_18] : memref<1x4xf32, #tpu.memory_space<vmem>>, vector<1x4xf32>
    %28 = vector.broadcast %27 : vector<1x4xf32> to vector<2x4xf32>
    %29 = arith.addf %26, %28 : vector<2x4xf32>
    %c0_19 = arith.constant 0 : index
    %c0_20 = arith.constant 0 : index
    %30 = vector.load %arg9[%c0_19, %c0_20] : memref<2x4xf32, #tpu.memory_space<vmem>>, vector<2x4xf32>
    tpu.vector_store %arg9[%c0_19, %c0_20], %29 {strides = array<i32>} : memref<2x4xf32, #tpu.memory_space<vmem>>, vector<2x4xf32>,
    return
  }
  func.func @transform_0(%arg0: i32) -> (i32, i32) {
    %c0_i32 = arith.constant 0 : i32
    %c0_i32_0 = arith.constant 0 : i32
    return %arg0, %c0_i32 : i32, i32
  }
  func.func @transform_1(%arg0: i32) -> (i32, i32) {
    %c0_i32 = arith.constant 0 : i32
    %c0_i32_0 = arith.constant 0 : i32
    %c0_i32_1 = arith.constant 0 : i32
    return %c0_i32, %c0_i32_0 : i32, i32
  }
  func.func @transform_2(%arg0: i32) -> (i32, i32) {
    %c0_i32 = arith.constant 0 : i32
    %c0_i32_0 = arith.constant 0 : i32
    %c0_i32_1 = arith.constant 0 : i32
    return %c0_i32, %c0_i32_0 : i32, i32
  }
  func.func @transform_3(%arg0: i32) -> (i32, i32) {
    %c0_i32 = arith.constant 0 : i32
    %c0_i32_0 = arith.constant 0 : i32
    %c0_i32_1 = arith.constant 0 : i32
    return %c0_i32, %c0_i32_0 : i32, i32
  }
  func.func @transform_4(%arg0: i32) -> (i32, i32) {
    %c0_i32 = arith.constant 0 : i32
    %c0_i32_0 = arith.constant 0 : i32
    %c0_i32_1 = arith.constant 0 : i32
    return %c0_i32, %c0_i32_0 : i32, i32
  }
  func.func @transform_5(%arg0: i32) -> (i32, i32) {
    %c0_i32 = arith.constant 0 : i32
    %c0_i32_0 = arith.constant 0 : i32
    %c0_i32_1 = arith.constant 0 : i32
    return %c0_i32, %c0_i32_0 : i32, i32
  }
  func.func @transform_6(%arg0: i32) -> (i32, i32) {
    %c0_i32 = arith.constant 0 : i32
    %c0_i32_0 = arith.constant 0 : i32
    %c0_i32_1 = arith.constant 0 : i32
    return %c0_i32, %c0_i32_0 : i32, i32
  }
  func.func @transform_7(%arg0: i32) -> (i32, i32) {
    %c0_i32 = arith.constant 0 : i32
    %c0_i32_0 = arith.constant 0 : i32
    %c0_i32_1 = arith.constant 0 : i32
    return %c0_i32, %c0_i32_0 : i32, i32
  }
  func.func @transform_8(%arg0: i32) -> (i32, i32) {
    %c0_i32 = arith.constant 0 : i32
    %c0_i32_0 = arith.constant 0 : i32
    return %arg0, %c0_i32 : i32, i32
  }
}

</mosaic_0001>

<llo_original>
// kernel: tpu_custom_call.1
$region0: #{tpu_custom_call.1}
  #allocation0 [shape = 'u32[]', space=smem, size = 0x4, offset = 0x4, fixed_abs, tag = 'smem constant byte address 0x4 - core index']
  #allocation1 [shape = 'u32[144,128]{1,0:T(1,128)}', space=vmem, size = 0x12000, scoped, tag = 'internal scratch']
  %s0 = inlined_call_operand.vmem [shape: f32[2,8], index: 0, kind: input, shape index: {}]
  %s1 = inlined_call_operand.vmem [shape: bf16[8,128], index: 1, kind: input, shape index: {}]
  %s2 = inlined_call_operand.vmem [shape: f32[1,128], index: 2, kind: input, shape index: {}]
  %s3 = inlined_call_operand.vmem [shape: bf16[128,5], index: 3, kind: input, shape index: {}]
  %s4 = inlined_call_operand.vmem [shape: f32[1,5], index: 4, kind: input, shape index: {}]
  %s5 = inlined_call_operand.vmem [shape: bf16[4,4], index: 5, kind: input, shape index: {}]
  %s6 = inlined_call_operand.vmem [shape: f32[1,4], index: 6, kind: input, shape index: {}]
  %s7 = inlined_call_operand.vmem [shape: f32[1,4], index: 7, kind: input, shape index: {}]
  %s8 = inlined_call_operand.hbm [shape: f32[2,4], index: 8, kind: output, shape index: {}]
  %s9 = sld [smem:[#allocation0]]
  $region42: #{tpu_custom_call.1} parent=0
    _
  %s11 = ssub.s32 1, %s9
  %s12 = scalar_select 0, %s11, %s9
  $region1: #{tpu_custom_call.1} parent=0
    #allocation2 [shape = 'u8[1024]{0}', space=vmem, size = 0x400, scoped, tag = 'output window, operand 0, single buffered']
    #allocation3 [shape = 's32[1]{0}', space=sflag, size = 0x4, scoped, tag = 'scoped memory for tpu_custom_call.1']
    %13 = vsyncpa [#allocation3], 0
    // Predicated region
    $region2: #{tpu_custom_call.1} parent=1 // pred_check
      _
    $region3: #{tpu_custom_call.1} parent=1 // pred_check_branch
      %15 = sbr.rel (0) target = $region5
    $region4: #{tpu_custom_call.1} parent=1 // pred_region
      _
    $region5: #{tpu_custom_call.1} parent=1 // pred_fallthru
      _
    // Predicated region
    $region6: #{tpu_custom_call.1} parent=1 // pred_check
      _
    $region7: #{tpu_custom_call.1} parent=1 // pred_check_branch
      %17 = sbr.rel (0) target = $region9
    $region8: #{tpu_custom_call.1} parent=1 // pred_region
      _
    $region9: #{tpu_custom_call.1} parent=1 // pred_fallthru
      _
    // Predicated region
    $region10: #{tpu_custom_call.1} parent=1 // pred_check
      _
    $region11: #{tpu_custom_call.1} parent=1 // pred_check_branch
      %19 = sbr.rel (0) target = $region13
    $region12: #{tpu_custom_call.1} parent=1 // pred_region
      _
    $region13: #{tpu_custom_call.1} parent=1 // pred_fallthru
      _
    // Predicated region
    $region14: #{tpu_custom_call.1} parent=1 // pred_check
      _
    $region15: #{tpu_custom_call.1} parent=1 // pred_check_branch
      %21 = sbr.rel (0) target = $region17
    $region16: #{tpu_custom_call.1} parent=1 // pred_region
      _
    $region17: #{tpu_custom_call.1} parent=1 // pred_fallthru
      _
    // Predicated region
    $region18: #{tpu_custom_call.1} parent=1 // pred_check
      _
    $region19: #{tpu_custom_call.1} parent=1 // pred_check_branch
      %23 = sbr.rel (0) target = $region21
    $region20: #{tpu_custom_call.1} parent=1 // pred_region
      _
    $region21: #{tpu_custom_call.1} parent=1 // pred_fallthru
      _
    // Predicated region
    $region22: #{tpu_custom_call.1} parent=1 // pred_check
      _
    $region23: #{tpu_custom_call.1} parent=1 // pred_check_branch
      %25 = sbr.rel (0) target = $region25
    $region24: #{tpu_custom_call.1} parent=1 // pred_region
      _
    $region25: #{tpu_custom_call.1} parent=1 // pred_fallthru
      _
    // Predicated region
    $region26: #{tpu_custom_call.1} parent=1 // pred_check
      _
    $region27: #{tpu_custom_call.1} parent=1 // pred_check_branch
      %27 = sbr.rel (0) target = $region29
    $region28: #{tpu_custom_call.1} parent=1 // pred_region
      _
    $region29: #{tpu_custom_call.1} parent=1 // pred_fallthru
      _
    // Predicated region
    $region30: #{tpu_custom_call.1} parent=1 // pred_check
      _
    $region31: #{tpu_custom_call.1} parent=1 // pred_check_branch
      %29 = sbr.rel (0) target = $region33
    $region32: #{tpu_custom_call.1} parent=1 // pred_region
      _
    $region33: #{tpu_custom_call.1} parent=1 // pred_fallthru
      _
    %v31 = vld [vmem:[%s0] sm:$0x3]
    %v32 = vpack.c.bf16 %v31, %v31
    %v33 = vld [vmem:[%s1] sm:$0xf]
    %v34 = vld [vmem:[%s2] sm:$0x1]
    %v36 = vlaneseq
    %v37 = vshrl.u32 %v36, 7
    %v38 = vsub.s32 0, %v37
    %v39 = vrot.slane %v34, %v38
    %vm41 = vcmask 64512
    %v43 = vsel %vm41, %v32, 0
    %vm45 = vcmask 1043456
    %v47 = vsel %vm45, %v33, 0
    %49 = vmatprep.subr.bf16.mxu0 0
    %50 = vmatpush1.bf16.msra.mxu0 %v47
    %51 = vmatprep.subr.bf16.mxu0 0
    %52 = vmatpush1.bf16.msra.mxu0 0
    %53 = vmatprep.subr.bf16.mxu0 0
    %54 = vmatpush1.bf16.msra.mxu0 0
    %55 = vmatprep.subr.bf16.mxu0 0
    %56 = vmatpush1.bf16.msra.mxu0 0
    %57 = vmatprep.subr.bf16.mxu0 0
    %58 = vmatpush1.bf16.msra.mxu0 0
    %59 = vmatprep.subr.bf16.mxu0 0
    %60 = vmatpush1.bf16.msra.mxu0 0
    %61 = vmatprep.subr.bf16.mxu0 0
    %62 = vmatpush1.bf16.msra.mxu0 0
    %63 = vmatprep.subr.bf16.mxu0 0
    %64 = vmatpush1.bf16.msra.mxu0 0
    %65 = vmatprep.subr.bf16.mxu0 0
    %66 = vmatpush1.bf16.msra.mxu0 0
    %67 = vmatprep.subr.bf16.mxu0 0
    %68 = vmatpush1.bf16.msra.mxu0 0
    %69 = vmatprep.subr.bf16.mxu0 0
    %70 = vmatpush1.bf16.msra.mxu0 0
    %71 = vmatprep.subr.bf16.mxu0 0
    %72 = vmatpush1.bf16.msra.mxu0 0
    %73 = vmatprep.subr.bf16.mxu0 0
    %74 = vmatpush1.bf16.msra.mxu0 0
    %75 = vmatprep.subr.bf16.mxu0 0
    %76 = vmatpush1.bf16.msra.mxu0 0
    %77 = vmatprep.subr.bf16.mxu0 0
    %78 = vmatpush1.bf16.msra.mxu0 0
    %79 = vmatprep.subr.bf16.mxu0 0
    %80 = vmatpush1.bf16.msra.mxu0 0
    %81 = vmatprep.mubr.bf16.mxu0 0
    %82 = vmatmul.mubr.bf16.gmra.mrb[0].mxu0 %v43
    %v83 = vpop.f32.mrb[0].mxu0
    %v84 = vadd.f32 %v39, %v83
    %v85 = vpop.f32.mrb[0].mxu0
    %v86 = vpop.f32.mrb[0].mxu0
    %v87 = vpop.f32.mrb[0].mxu0
    %88 = vdwg.mxu0
    %v89 = vmax.f32 %v84, 0.0
    %v90 = vpack.c.bf16 %v89, %v89
    %v91 = vld [vmem:[%s3] sm:$0xf]
    %v92 = vld [vmem:[%s3 + $0x4] sm:$0xf]
    %v93 = vld [vmem:[%s3 + $0x8] sm:$0xf]
    %v94 = vld [vmem:[%s3 + $0xc] sm:$0xf]
    %v95 = vld [vmem:[%s3 + $0x10] sm:$0xf]
    %v96 = vld [vmem:[%s3 + $0x14] sm:$0xf]
    %v97 = vld [vmem:[%s3 + $0x18] sm:$0xf]
    %v98 = vld [vmem:[%s3 + $0x1c] sm:$0xf]
    %v99 = vld [vmem:[%s3 + $0x20] sm:$0xf]
    %v100 = vld [vmem:[%s3 + $0x24] sm:$0xf]
    %v101 = vld [vmem:[%s3 + $0x28] sm:$0xf]
    %v102 = vld [vmem:[%s3 + $0x2c] sm:$0xf]
    %v103 = vld [vmem:[%s3 + $0x30] sm:$0xf]
    %v104 = vld [vmem:[%s3 + $0x34] sm:$0xf]
    %v105 = vld [vmem:[%s3 + $0x38] sm:$0xf]
    %v106 = vld [vmem:[%s3 + $0x3c] sm:$0xf]
    %v107 = vld [vmem:[%s4] sm:$0x1]
    %v109 = vlaneseq
    %v110 = vshrl.u32 %v109, 7
    %v111 = vsub.s32 0, %v110
    %v112 = vrot.slane %v107, %v111
    %v130 = vunpack.c.l.b16 %v91
    %v131 = vunpack.c.l.b16 %v92
    %v132 = vunpack.c.l.b16 %v93
    %v133 = vunpack.c.l.b16 %v94
    %v134 = vunpack.c.l.b16 %v95
    %v135 = vunpack.c.l.b16 %v96
    %v136 = vunpack.c.l.b16 %v97
    %v137 = vunpack.c.l.b16 %v98
    %v138 = vunpack.c.l.b16 %v99
    %v139 = vunpack.c.l.b16 %v100
    %v140 = vunpack.c.l.b16 %v101
    %v141 = vunpack.c.l.b16 %v102
    %v142 = vunpack.c.l.b16 %v103
    %v143 = vunpack.c.l.b16 %v104
    %v144 = vunpack.c.l.b16 %v105
    %v145 = vunpack.c.l.b16 %v106
    %v146 = vpack.c.b16 %v131, %v130
    %v147 = vpack.c.b16 %v133, %v132
    %v148 = vpack.c.b16 %v135, %v134
    %v149 = vpack.c.b16 %v137, %v136
    %v150 = vpack.c.b16 %v139, %v138
    %v151 = vpack.c.b16 %v141, %v140
    %v152 = vpack.c.b16 %v143, %v142
    %v153 = vpack.c.b16 %v145, %v144
    %162 = vmatprep.subr.bf16.mxu0 0
    %163 = vmatpush1.bf16.msra.mxu0 %v146
    %164 = vmatprep.subr.bf16.mxu0 0
    %165 = vmatpush1.bf16.msra.mxu0 %v147
    %166 = vmatprep.subr.bf16.mxu0 0
    %167 = vmatpush1.bf16.msra.mxu0 %v148
    %168 = vmatprep.subr.bf16.mxu0 0
    %169 = vmatpush1.bf16.msra.mxu0 %v149
    %170 = vmatprep.subr.bf16.mxu0 0
    %171 = vmatpush1.bf16.msra.mxu0 %v150
    %172 = vmatprep.subr.bf16.mxu0 0
    %173 = vmatpush1.bf16.msra.mxu0 %v151
    %174 = vmatprep.subr.bf16.mxu0 0
    %175 = vmatpush1.bf16.msra.mxu0 %v152
    %176 = vmatprep.subr.bf16.mxu0 0
    %177 = vmatpush1.bf16.msra.mxu0 %v153
    %178 = vmatprep.subr.bf16.mxu0 0
    %179 = vmatpush1.bf16.msra.mxu0 0
    %180 = vmatprep.subr.bf16.mxu0 0
    %181 = vmatpush1.bf16.msra.mxu0 0
    %182 = vmatprep.subr.bf16.mxu0 0
    %183 = vmatpush1.bf16.msra.mxu0 0
    %184 = vmatprep.subr.bf16.mxu0 0
    %185 = vmatpush1.bf16.msra.mxu0 0
    %186 = vmatprep.subr.bf16.mxu0 0
    %187 = vmatpush1.bf16.msra.mxu0 0
    %188 = vmatprep.subr.bf16.mxu0 0
    %189 = vmatpush1.bf16.msra.mxu0 0
    %190 = vmatprep.subr.bf16.mxu0 0
    %191 = vmatpush1.bf16.msra.mxu0 0
    %192 = vmatprep.subr.bf16.mxu0 0
    %193 = vmatpush1.bf16.msra.mxu0 0
    %194 = vmatprep.mubr.bf16.mxu0 0
    %195 = vmatmul.mubr.bf16.gmra.mrb[0].mxu0 %v90
    %v196 = vpop.f32.mrb[0].mxu0
    %v197 = vadd.f32 %v112, %v196
    %v198 = vpop.f32.mrb[0].mxu0
    %v199 = vpop.f32.mrb[0].mxu0
    %v200 = vpop.f32.mrb[0].mxu0
    %201 = vdwg.mxu0
    %v202 = vmax.f32 %v197, 0.0
    %v203 = vpack.c.bf16 %v202, %v202
    %v204 = vld [vmem:[%s5] sm:$0x3]
    %v205 = vld [vmem:[%s6] sm:$0x1]
    %207 = vset.pattern.permute.xlu0 4
    %208 = vperm.xlu0 %207, %v202
    %v209 = vpop.permute.xlu0 %208
    %v212 = vlaneseq
    %v213 = vshrl.u32 %v212, 7
    %v214 = vsub.s32 0, %v213
    %v215 = vrot.slane %v205, %v214
    %v217 = vmul.f32 %v209, %v215
    %vm218 = vcmask 31744
    %v220 = vsel %vm218, %v203, 0
    %vm222 = vcmask 1041408
    %v224 = vsel %vm222, %v204, 0
    %226 = vmatprep.subr.bf16.mxu0 0
    %227 = vmatpush1.bf16.msra.mxu0 %v224
    %228 = vmatprep.subr.bf16.mxu0 0
    %229 = vmatpush1.bf16.msra.mxu0 0
    %230 = vmatprep.subr.bf16.mxu0 0
    %231 = vmatpush1.bf16.msra.mxu0 0
    %232 = vmatprep.subr.bf16.mxu0 0
    %233 = vmatpush1.bf16.msra.mxu0 0
    %234 = vmatprep.subr.bf16.mxu0 0
    %235 = vmatpush1.bf16.msra.mxu0 0
    %236 = vmatprep.subr.bf16.mxu0 0
    %237 = vmatpush1.bf16.msra.mxu0 0
    %238 = vmatprep.subr.bf16.mxu0 0
    %239 = vmatpush1.bf16.msra.mxu0 0
    %240 = vmatprep.subr.bf16.mxu0 0
    %241 = vmatpush1.bf16.msra.mxu0 0
    %242 = vmatprep.subr.bf16.mxu0 0
    %243 = vmatpush1.bf16.msra.mxu0 0
    %244 = vmatprep.subr.bf16.mxu0 0
    %245 = vmatpush1.bf16.msra.mxu0 0
    %246 = vmatprep.subr.bf16.mxu0 0
    %247 = vmatpush1.bf16.msra.mxu0 0
    %248 = vmatprep.subr.bf16.mxu0 0
    %249 = vmatpush1.bf16.msra.mxu0 0
    %250 = vmatprep.subr.bf16.mxu0 0
    %251 = vmatpush1.bf16.msra.mxu0 0
    %252 = vmatprep.subr.bf16.mxu0 0
    %253 = vmatpush1.bf16.msra.mxu0 0
    %254 = vmatprep.subr.bf16.mxu0 0
    %255 = vmatpush1.bf16.msra.mxu0 0
    %256 = vmatprep.subr.bf16.mxu0 0
    %257 = vmatpush1.bf16.msra.mxu0 0
    %258 = vmatprep.mubr.bf16.mxu0 0
    %259 = vmatmul.mubr.bf16.gmra.mrb[0].mxu0 %v220
    %v260 = vpop.f32.mrb[0].mxu0
    %v261 = vadd.f32 %v217, %v260
    %v262 = vpop.f32.mrb[0].mxu0
    %v263 = vpop.f32.mrb[0].mxu0
    %v264 = vpop.f32.mrb[0].mxu0
    %265 = vdwg.mxu0
    %v266 = vld [vmem:[%s7] sm:$0x1]
    %v268 = vlaneseq
    %v269 = vshrl.u32 %v268, 7
    %v270 = vsub.s32 0, %v269
    %v271 = vrot.slane %v266, %v270
    %v273 = vadd.f32 %v261, %v271
    %vm274 = vcmask 25600
    %275 = vst.msk [vmem:[#allocation2] sm:$0x3] %vm274, %v273
    // Predicated region
    $region34: #{tpu_custom_call.1} parent=1 // pred_check
      _
    $region35: #{tpu_custom_call.1} parent=1 // pred_check_branch
      %277 = sbr.rel (0) target = $region37
    $region36: #{tpu_custom_call.1} parent=1 // pred_region
      %s279 = ssub.s32 32, 32
      %280 = vsyncadd [#allocation3], %s279
      %s282 = sshll.u32 [#allocation2], 4
      %s283 = int_to_ptr.vmem [resolvable:$true] %s282
      %285 = dma.vmem_to_hbm [thread:$0]  %s283, 32, %s8, [#allocation3]
    $region37: #{tpu_custom_call.1} parent=1 // pred_fallthru
      _
    // Predicated region
    $region38: #{tpu_custom_call.1} parent=1 // pred_check
      _
    $region39: #{tpu_custom_call.1} parent=1 // pred_check_branch
      %287 = sbr.rel (0) target = $region41
    $region40: #{tpu_custom_call.1} parent=1 // pred_region
      %288 = dma.done [#allocation3], 32
    $region41: #{tpu_custom_call.1} parent=1 // pred_fallthru
      _
    %289 = vsyncpa [#allocation3], 1

</llo_original>
